<compile_context>
chip_gen: v5e
topology: v5e:2x2
jax: 0.10.0
libtpu: 0.0.40
codegen_flags: <defaults>
</compile_context>

<pallas_src>
import numpy as np
import jax
import jax.numpy as jnp
from jax import lax
from jax.experimental import pallas as pl
from jax.experimental.pallas import tpu as pltpu

BINS = (1, 2, 3, 6)
BIN_SQ = tuple(b * b for b in BINS)                       # (1, 4, 9, 36)
BIN_OFF = (0, 1, 5, 14)                                   # packed row offsets
BP = sum(BIN_SQ)                                          # 50 real pooled rows
BP_PAD = ((BP + 7) // 8) * 8                              # 56, sublane aligned
EPS = 1e-5
COMPUTE_DTYPE = jnp.bfloat16                              # storage / MXU dtype


# ----------------------------------------------------------------------------
# host-side glue: adaptive-avg-pool and align_corners-bilinear as matrices
# ----------------------------------------------------------------------------
def _adaptive_pool_matrix(in_size, out_size):
    P = np.zeros((out_size, in_size), dtype=np.float32)
    for i in range(out_size):
        start = (i * in_size) // out_size
        end = -((-(i + 1) * in_size) // out_size)          # ceil division
        P[i, start:end] = 1.0 / (end - start)
    return P


def _bilinear_matrix(out_size, in_size):
    U = np.zeros((out_size, in_size), dtype=np.float32)
    for y in range(out_size):
        src = 0.0 if (in_size == 1 or out_size == 1) else y * (in_size - 1) / (out_size - 1)
        i0 = min(int(np.floor(src)), in_size - 1)
        i1 = min(i0 + 1, in_size - 1)
        w1 = src - i0
        U[y, i0] += 1.0 - w1
        U[y, i1] += w1
    return U


def make_branch_matrices(H, W):
    """Per-branch f32 (P, U): P (bin^2, HW), U (HW, bin^2)."""
    mats = []
    for b in BINS:
        P = np.kron(_adaptive_pool_matrix(H, b), _adaptive_pool_matrix(W, b))
        U = np.kron(_bilinear_matrix(H, b), _bilinear_matrix(W, b))
        mats.append((P, U))
    return mats


def make_stacked_operators(H, W, HWp):
    """P_all / UT_all: (BP_PAD, HWp) bf16, zero rows/cols in all padding."""
    HW = H * W
    P_all = np.zeros((BP_PAD, HWp), dtype=np.float32)
    UT_all = np.zeros((BP_PAD, HWp), dtype=np.float32)
    for g, (P, U) in enumerate(make_branch_matrices(H, W)):
        off, sq = BIN_OFF[g], BIN_SQ[g]
        P_all[off:off + sq, :HW] = P
        UT_all[off:off + sq, :HW] = U.T
    return (jnp.asarray(P_all, dtype=COMPUTE_DTYPE),
            jnp.asarray(UT_all, dtype=COMPUTE_DTYPE))


def _vmem_budget():
    """(physical VMEM, scoped limit): ~62% of physical, capped at 64 MiB."""
    try:
        cap = int(pltpu.get_tpu_info().vmem_capacity_bytes)
    except Exception:
        cap = 128 * 1024 * 1024
    return cap, min(64 * 1024 * 1024, (cap * 5) // 8)      # 64 MiB v5e/v6e, 40 MiB v7x


def _choose_hw_tile(hw, c, vmem_cap):
    """(THW, HWp): tile is a 128-multiple (or full HW); HWp is a tile multiple."""
    big_vmem = vmem_cap >= 96 * 1024 * 1024
    target = 1024 if (big_vmem or c < 1024) else 512       # smaller tiles on v7x @ big C
    if hw <= target:
        return hw, hw                                      # single full-dim block
    lo = 256 if target >= 256 else 128
    best_t, best_hwp = None, None
    for t in range(target, lo - 1, -128):                  # minimize pad, prefer big tile
        hwp = -(-hw // t) * t
        if best_hwp is None or hwp < best_hwp:
            best_t, best_hwp = t, hwp
    return best_t, best_hwp


# ----------------------------------------------------------------------------
# Kernel A: stacked pooled reduction over HW tiles (NCHW-native).
#   pooled (BP_PAD, C) += P_tile (BP_PAD, THW) @ x_tile(C, THW)^T
#   (A @ B^T contraction on the lane dim -- the flash-attention MXU pattern,
#    so both the output lane dim (C) and contraction stay MXU-efficient.)
# ----------------------------------------------------------------------------
def _pooled_kernel(p_ref, x_ref, pooled_ref, acc_ref):
    kt = pl.program_id(1)

    @pl.when(kt == 0)
    def _():
        acc_ref[...] = jnp.zeros_like(acc_ref)

    xt = x_ref[0].astype(p_ref.dtype)          # (C, THW) -> bf16 cast on the VPU
    acc_ref[...] += lax.dot_general(
        p_ref[...], xt, (((1,), (1,)), ((), ())),
        preferred_element_type=jnp.float32)

    @pl.when(kt == pl.num_programs(1) - 1)
    def _():
        pooled_ref[0] = acc_ref[...]


# ----------------------------------------------------------------------------
# Kernel B: fused per-pixel bottleneck (NCHW-native, dominant matmul).
#   out (Cout, THW) = ReLU( Wb0^T @ x_tile + Z^T @ U^T_tile + bias )
# ----------------------------------------------------------------------------
def _pixel_kernel(x_ref, ut_ref, zt_ref, w0t_ref, bbt_ref, o_ref):
    xt = x_ref[0].astype(w0t_ref.dtype)                         # (C, THW) bf16
    acc = jnp.dot(w0t_ref[...], xt, preferred_element_type=jnp.float32)
    acc = acc + jnp.dot(zt_ref[0], ut_ref[...], preferred_element_type=jnp.float32)
    o_ref[0] = jnp.maximum(acc + bbt_ref[...], 0.0).astype(o_ref.dtype)


# ----------------------------------------------------------------------------
# tiny XLA mid-step: 50-pixel branch 1x1 convs + bottleneck-V fold -> Z^T
#   (~0.3 GFLOP at real PSPNet sizes, <3% of the op; keeping it out of the
#    Pallas kernel removes the 4x(C,C) weights from VMEM entirely.)
# ----------------------------------------------------------------------------
def _branch_epilogue(pooled, params):
    z_parts = []
    for g in range(len(BINS)):
        off, sq = BIN_OFF[g], BIN_SQ[g]
        pg = pooled[:, off:off + sq, :]                                    # (N, sq, C)
        y = jnp.maximum(
            jnp.einsum('npc,cd->npd', pg, params["w_branch"][g])
            + params["b_branch"][g], 0.0)
        z_parts.append(jnp.einsum('npc,cd->npd', y, params["v_branch"][g]))
    z = jnp.concatenate(z_parts, axis=1)                                   # (N, BP, Cout)
    z = jnp.pad(z, ((0, 0), (0, BP_PAD - BP), (0, 0)))
    return jnp.transpose(z, (0, 2, 1)).astype(COMPUTE_DTYPE)               # (N, Cout, BP_PAD)


# ----------------------------------------------------------------------------
# wrapper
# ----------------------------------------------------------------------------
def pyramid_pooling_forward(x_nchw, params, out_dtype=None):
    N, C, H, W = x_nchw.shape
    HW = H * W
    Cout = params["w0t"].shape[0]
    if out_dtype is None:
        out_dtype = x_nchw.dtype          # pass jnp.bfloat16 to halve writeback bytes

    vmem_cap, vmem_limit = _vmem_budget()
    THW, HWp = _choose_hw_tile(HW, C, vmem_cap)
    KT = HWp // THW

    P_all, UT_all = make_stacked_operators(H, W, HWp)

    # NCHW-native: (N, C, HW) is a free reshape -- no boundary transposes.
    x3 = x_nchw.reshape(N, C, HW)
    if HWp != HW:
        # one-time zero pad so every HW tile is full; P/U are zero in the pad.
        x3 = jnp.pad(x3, ((0, 0), (0, 0), (0, HWp - HW)))
    x_bytes = x3.dtype.itemsize

    # ---- pass 1: stacked pooled block (N, BP_PAD, C) ------------------------
    pooled = pl.pallas_call(
        _pooled_kernel,
        grid=(N, KT),
        in_specs=[pl.BlockSpec((BP_PAD, THW), lambda n, k: (0, k)),
                  pl.BlockSpec((1, C, THW), lambda n, k: (n, 0, k))],
        out_specs=pl.BlockSpec((1, BP_PAD, C), lambda n, k: (n, 0, 0)),
        out_shape=jax.ShapeDtypeStruct((N, BP_PAD, C), jnp.float32),
        scratch_shapes=[pltpu.VMEM((BP_PAD, C), jnp.float32)],
        compiler_params=pltpu.CompilerParams(
            dimension_semantics=("parallel", "arbitrary"),
            vmem_limit_bytes=vmem_limit),
        cost_estimate=pl.CostEstimate(
            flops=2 * N * HWp * BP_PAD * C, transcendentals=0,
            bytes_accessed=N * HWp * C * x_bytes + BP_PAD * HWp * 2
                           + N * BP_PAD * C * 4),
    )(P_all, x3)

    # ---- tiny XLA step: branch convs + bottleneck fold -> Z^T ---------------
    zt = _branch_epilogue(pooled, params)                     # (N, Cout, BP_PAD) bf16

    # ---- pass 2: per-pixel fused bottleneck ---------------------------------
    out = pl.pallas_call(
        _pixel_kernel,
        grid=(N, KT),
        in_specs=[pl.BlockSpec((1, C, THW), lambda n, m: (n, 0, m)),
                  pl.BlockSpec((BP_PAD, THW), lambda n, m: (0, m)),
                  pl.BlockSpec((1, Cout, BP_PAD), lambda n, m: (n, 0, 0)),
                  pl.BlockSpec((Cout, C), lambda n, m: (0, 0)),
                  pl.BlockSpec((Cout, 1), lambda n, m: (0, 0))],
        out_specs=pl.BlockSpec((1, Cout, THW), lambda n, m: (n, 0, m)),
        out_shape=jax.ShapeDtypeStruct((N, Cout, HWp), out_dtype),
        compiler_params=pltpu.CompilerParams(
            dimension_semantics=("parallel", "parallel"),
            vmem_limit_bytes=vmem_limit),
        cost_estimate=pl.CostEstimate(
            flops=2 * N * HWp * Cout * (C + BP_PAD), transcendentals=0,
            bytes_accessed=N * HWp * C * x_bytes + BP_PAD * HWp * 2
                           + N * Cout * BP_PAD * 2 + Cout * C * 2
                           + N * HWp * Cout * np.dtype(out_dtype).itemsize),
    )(x3, UT_all, zt, params["w0t"], params["bbt"])

    if HWp != HW:
        out = out[:, :, :HW]
    return out.reshape(N, Cout, H, W)


# ----------------------------------------------------------------------------
# deterministic parameter init: BN at default init (gamma=1, beta=0, mean=0,
# var=1) folded into the conv weights; only the (zero) bias remains.
# ----------------------------------------------------------------------------
def init_params(key, C, Cout):
    keys = jax.random.split(key, len(BINS) + 1)
    bn_scale = np.float32(1.0 / np.sqrt(1.0 + EPS))
    Wb = jax.random.normal(keys[-1], (C * (len(BINS) + 1), Cout), jnp.float32) * 0.2
    Wb_fold = Wb * bn_scale
    w_branch, b_branch, v_branch = [], [], []
    for i in range(len(BINS)):
        Wp = jax.random.normal(keys[i], (C, C), jnp.float32) * 0.2
        w_branch.append(Wp * bn_scale)                               # folded, f32 (XLA step)
        b_branch.append(jnp.zeros((1, C), jnp.float32))
        v_branch.append(Wb_fold[(i + 1) * C:(i + 2) * C, :])         # bottleneck rows, f32
    w0t = jnp.transpose(Wb_fold[0:C, :]).astype(COMPUTE_DTYPE)       # (Cout, C) bf16
    bbt = jnp.zeros((Cout, 1), jnp.float32)
    return {"w_branch": w_branch, "b_branch": b_branch, "v_branch": v_branch,
            "w0t": w0t, "bbt": bbt}


# pure-JAX reference (same linear operators; bf16-rounds the operands the
# Pallas path stores in bf16 so the comparison is tight)
def reference_forward(x_nchw, params, branch_mats):
    N, C, H, W = x_nchw.shape
    HW = H * W

    def r(a):
        return jnp.asarray(a).astype(jnp.bfloat16).astype(jnp.float32)

    x = jnp.transpose(x_nchw, (0, 2, 3, 1)).reshape(N, HW, C).astype(jnp.float32)
    xb = r(x)
    acc = jnp.einsum('nkc,dc->nkd', xb, r(params["w0t"]))
    for g, (P, U) in enumerate(branch_mats):
        pooled = jnp.einsum('pk,nkc->npc', r(P), xb)
        y = jnp.maximum(jnp.einsum('npc,cd->npd', pooled, params["w_branch"][g])
                        + params["b_branch"][g], 0.0)
        z = jnp.einsum('npc,cd->npd', y, params["v_branch"][g])
        acc = acc + jnp.einsum('kp,npd->nkd', r(U), r(z))
    out = jnp.maximum(acc + params["bbt"][:, 0][None, None, :], 0.0)
    Cout = params["w0t"].shape[0]
    return jnp.transpose(out.reshape(N, H, W, Cout), (0, 3, 1, 2))


if __name__ == "__main__":
    key = jax.random.PRNGKey(0)
    kx, kp = jax.random.split(key)
    N, C, H, W = 2, 4, 16, 16
    Cout = 8

    x = jax.random.normal(kx, (N, C, H, W), jnp.float32)
    params = init_params(kp, C, Cout)

    out = pyramid_pooling_forward(x, params)
    out = jax.block_until_ready(out)

    branch_mats = make_branch_matrices(H, W)
    ref = jax.block_until_ready(reference_forward(x, params, branch_mats))

    assert out.shape == (N, Cout, H, W)
    np.testing.assert_allclose(np.asarray(out, np.float32), np.asarray(ref),
                               rtol=2e-2, atol=2e-2)
    print("KERNEL_OK")
</pallas_src>

<mosaic_0001>
module attributes {stable_mosaic.version = 11 : i64} {
  func.func @_pooled_kernel(%arg0: i32, %arg1: i32, %arg2: memref<56x256xbf16, #tpu.memory_space<vmem>>, %arg3: memref<1x4x256xf32, #tpu.memory_space<vmem>>, %arg4: memref<1x56x4xf32, #tpu.memory_space<vmem>>, %arg5: memref<56x4xf32, #tpu.memory_space<vmem>>) attributes {dimension_semantics = [#tpu.dimension_semantics<parallel>, #tpu.dimension_semantics<arbitrary>], iteration_bounds = array<i64: 2, 1>, scalar_prefetch = 0 : i64, scratch_operands = 1 : i64, tpu.core_type = #tpu.core_type<tc>, window_params = [{transform_indices = @transform_0, window_bounds = array<i64: 56, 256>}, {transform_indices = @transform_1, window_bounds = array<i64: 1, 4, 256>}, {transform_indices = @transform_2, window_bounds = array<i64: 1, 56, 4>}]} {
    %c0_i32 = arith.constant 0 : i32
    %0 = arith.cmpi eq, %arg1, %c0_i32 : i32
    %1 = arith.extui %0 : i1 to i32
    %c0_i32_0 = arith.constant 0 : i32
    %2 = arith.cmpi ne, %1, %c0_i32_0 : i32
    scf.if %2 {
      %cst_11 = arith.constant 0.000000e+00 : f32
      %14 = vector.broadcast %cst_11 : f32 to vector<56x4xf32>
      %c0_12 = arith.constant 0 : index
      %c0_13 = arith.constant 0 : index
      %15 = vector.load %arg5[%c0_12, %c0_13] : memref<56x4xf32, #tpu.memory_space<vmem>>, vector<56x4xf32>
      tpu.vector_store %arg5[%c0_12, %c0_13], %14 {strides = array<i32>} : memref<56x4xf32, #tpu.memory_space<vmem>>, vector<56x4xf32>,
    } else {
    }
    %c0 = arith.constant 0 : index
    %c0_1 = arith.constant 0 : index
    %c0_2 = arith.constant 0 : index
    %3 = vector.load %arg3[%c0, %c0_1, %c0_2] : memref<1x4x256xf32, #tpu.memory_space<vmem>>, vector<1x4x256xf32>
    %4 = vector.shape_cast %3 : vector<1x4x256xf32> to vector<4x256xf32>
    %5 = arith.truncf %4 : vector<4x256xf32> to vector<4x256xbf16>
    %c0_3 = arith.constant 0 : index
    %c0_4 = arith.constant 0 : index
    %6 = vector.load %arg5[%c0_3, %c0_4] : memref<56x4xf32, #tpu.memory_space<vmem>>, vector<56x4xf32>
    %c0_5 = arith.constant 0 : index
    %c0_6 = arith.constant 0 : index
    %7 = vector.load %arg2[%c0_5, %c0_6] : memref<56x256xbf16, #tpu.memory_space<vmem>>, vector<56x256xbf16>
    %cst = arith.constant dense<0.000000e+00> : vector<56x4xf32>
    %8 = tpu.matmul %7, %5, %cst {dimension_numbers = #tpu.dot_dimension_numbers<[1], [1], [0], [0], [0, 0, 1, 0], [], []>} : vector<56x256xbf16>, vector<4x256xbf16>, vector<56x4xf32> -> vector<56x4xf32>
    %9 = arith.addf %6, %8 : vector<56x4xf32>
    %c0_7 = arith.constant 0 : index
    %c0_8 = arith.constant 0 : index
    %10 = vector.load %arg5[%c0_7, %c0_8] : memref<56x4xf32, #tpu.memory_space<vmem>>, vector<56x4xf32>
    tpu.vector_store %arg5[%c0_7, %c0_8], %9 {strides = array<i32>} : memref<56x4xf32, #tpu.memory_space<vmem>>, vector<56x4xf32>,
    %c0_i32_9 = arith.constant 0 : i32
    %11 = arith.cmpi eq, %arg1, %c0_i32_9 : i32
    %12 = arith.extui %11 : i1 to i32
    %c0_i32_10 = arith.constant 0 : i32
    %13 = arith.cmpi ne, %12, %c0_i32_10 : i32
    scf.if %13 {
      %c0_11 = arith.constant 0 : index
      %c0_12 = arith.constant 0 : index
      %14 = vector.load %arg5[%c0_11, %c0_12] : memref<56x4xf32, #tpu.memory_space<vmem>>, vector<56x4xf32>
      %c0_13 = arith.constant 0 : index
      %c0_14 = arith.constant 0 : index
      %c0_15 = arith.constant 0 : index
      %15 = vector.load %arg4[%c0_13, %c0_14, %c0_15] : memref<1x56x4xf32, #tpu.memory_space<vmem>>, vector<1x56x4xf32>
      %16 = vector.shape_cast %15 : vector<1x56x4xf32> to vector<56x4xf32>
      %17 = vector.shape_cast %14 : vector<56x4xf32> to vector<1x56x4xf32>
      tpu.vector_store %arg4[%c0_13, %c0_14, %c0_15], %17 {strides = array<i32>} : memref<1x56x4xf32, #tpu.memory_space<vmem>>, vector<1x56x4xf32>,
    } else {
    }
    return
  }
  func.func @transform_0(%arg0: i32, %arg1: i32) -> (i32, i32) {
    %c0_i32 = arith.constant 0 : i32
    %c0_i32_0 = arith.constant 0 : i32
    return %c0_i32, %arg1 : i32, i32
  }
  func.func @transform_1(%arg0: i32, %arg1: i32) -> (i32, i32, i32) {
    %c0_i32 = arith.constant 0 : i32
    %c0_i32_0 = arith.constant 0 : i32
    return %arg0, %c0_i32, %arg1 : i32, i32, i32
  }
  func.func @transform_2(%arg0: i32, %arg1: i32) -> (i32, i32, i32) {
    %c0_i32 = arith.constant 0 : i32
    %c0_i32_0 = arith.constant 0 : i32
    %c0_i32_1 = arith.constant 0 : i32
    return %arg0, %c0_i32, %c0_i32_0 : i32, i32, i32
  }
}

</mosaic_0001>

<llo_original>
// kernel: tpu_custom_call.1
$region0: #{tpu_custom_call.1}
  #allocation0 [shape = 'u32[]', space=smem, size = 0x4, offset = 0x4, fixed_abs, tag = 'smem constant byte address 0x4 - core index']
  #allocation1 [shape = 'u32[72,128]{1,0:T(1,128)}', space=vmem, size = 0x9000, scoped, tag = 'internal scratch']
  #allocation2 [shape = 'f32[56,4]{1,0:T(8,128)}', space=vmem, size = 0x7000, scoped, tag = 'scratch operand']
  %s0 = inlined_call_operand.hbm [shape: bf16[56,256], index: 0, kind: input, shape index: {}]
  %s1 = inlined_call_operand.hbm [shape: f32[2,4,256], index: 1, kind: input, shape index: {}]
  %s2 = inlined_call_operand.vmem [shape: f32[2,56,4], index: 2, kind: output, shape index: {}]
  %s3 = sld [smem:[#allocation0]]
  $region57: #{tpu_custom_call.1} parent=0
    _
  %s5 = ssub.s32 1, %s3
  %s6 = scalar_select 0, %s5, %s3
  $region1: #{tpu_custom_call.1} parent=0
    #allocation3 [shape = 'u8[28672]{0}', space=vmem, size = 0x7000, scoped, tag = 'input window, operand 0, single buffered']
    #allocation4 [shape = 's32[2]{0}', space=sflag, size = 0x8, scoped, tag = 'scoped memory for tpu_custom_call.1']
    #allocation5 [shape = 'u8[8192]{0}', space=vmem, size = 0x2000, scoped, tag = 'input window, operand 1']
    #allocation6 [shape = 's32[2]{0}', space=sflag, size = 0x8, scoped, tag = 'scoped memory for tpu_custom_call.1']
    %7 = vsyncpa [#allocation4], 0
    %8 = vsyncpa [#allocation6], 0
    %s9 = scalar_lea.sflag [#allocation6], 1
    %10 = vsyncpa %s9, 0
    loop: start=0, step=1, limit=4
    $region2: #{tpu_custom_call.1} parent=1 // loop_pre_header
      _
    $region3: #{tpu_custom_call.1} parent=1 // loop_header
      %s12 = sphi 0, %s16
      %p13 = scmp.ge.s32.totalorder %s12, 4
      %s19 = sphi 0, %s31
      %s20 = sphi 0, %s27
      %s21 = sphi 0, %s19
      %s22 = sphi 0, %s20
      %s23 = sphi 0, %s21
      %s24 = sphi 0, %s22
      %s34 = sphi 0, %s36
      %s37 = sphi 0, %s34
      %s38 = sphi 0, %s37
      %s54 = sphi 0, %s38
      %s62 = sphi 0, %s64
      %s65 = sphi 0, %s62
      %s66 = sphi 0, %s65
      %s82 = sphi 0, %s66
      %s88 = sphi 0, %s90
      %s91 = sphi 0, %s88
      %s92 = sphi 0, %s91
      %s108 = sphi 0, %s92
    $region4: #{tpu_custom_call.1} parent=1 // loop_header_branch
      %15 = sbr.rel (%p13) target = $region8
    $region5: #{tpu_custom_call.1} parent=1 // loop_body
      %s17 = ssub.s32 %s12, 1
      %s18 = ssub.s32 %s12, 2
      %s25 = sadd.s32 1, %s20
      %p26 = scmp.ge.s32.totalorder %s25, 1
      %s27 = scalar_select %p26, 0, %s25
      %s28 = sadd.s32 1, %s19
      %s29 = scalar_select %p26, %s28, %s19
      %p30 = scmp.ge.s32.totalorder %s29, 2
      %s31 = scalar_select %p30, 0, %s29
      %s32 = ssub.s32 %s20, %s27
      %p33 = scmp.eq.s32.totalorder %s32, 0
      %s35 = sadd.s32 %s34, 1
      %s36 = scalar_select %p33, %s34, %s35
      %p39 = pneg %p33
      %p40 = scmp.eq.s32.totalorder %s12, 1
      %p41 = por %p39, %p40
      %p42 = scmp.ne.s32.totalorder %s34, %s37
      %p43 = scmp.eq.s32.totalorder %s12, 0
      %p44 = por %p42, %p43
      %p45 = scmp.ne.s32.totalorder %s34, %s37
      %p46 = scmp.eq.s32.totalorder %s17, 1
      %p47 = por %p45, %p46
      %p48 = scmp.ne.s32.totalorder %s37, %s38
      %p49 = scmp.eq.s32.totalorder %s17, 0
      %p50 = por %p48, %p49
      %p51 = scmp.ne.s32.totalorder %s37, %s38
      %p52 = scmp.eq.s32.totalorder %s18, 1
      %p53 = por %p51, %p52
      %p55 = scmp.ne.s32.totalorder %s38, %s54
      %p56 = scmp.eq.s32.totalorder %s18, 0
      %p57 = por %p55, %p56
      %s58 = ssub.s32 %s19, %s31
      %s59 = ssub.s32 %s20, %s27
      %s60 = sor.u32 %s58, %s59
      %p61 = scmp.eq.s32.totalorder %s60, 0
      %s63 = sadd.s32 %s62, 1
      %s64 = scalar_select %p61, %s62, %s63
      %p67 = pneg %p61
      %p68 = scmp.eq.s32.totalorder %s12, 1
      %p69 = por %p67, %p68
      %p70 = scmp.ne.s32.totalorder %s62, %s65
      %p71 = scmp.eq.s32.totalorder %s12, 0
      %p72 = por %p70, %p71
      %p73 = scmp.ne.s32.totalorder %s62, %s65
      %p74 = scmp.eq.s32.totalorder %s17, 1
      %p75 = por %p73, %p74
      %p76 = scmp.ne.s32.totalorder %s65, %s66
      %p77 = scmp.eq.s32.totalorder %s17, 0
      %p78 = por %p76, %p77
      %p79 = scmp.ne.s32.totalorder %s65, %s66
      %p80 = scmp.eq.s32.totalorder %s18, 1
      %p81 = por %p79, %p80
      %p83 = scmp.ne.s32.totalorder %s66, %s82
      %p84 = scmp.eq.s32.totalorder %s18, 0
      %p85 = por %p83, %p84
      %s86 = ssub.s32 %s19, %s31
      %p87 = scmp.eq.s32.totalorder %s86, 0
      %s89 = sadd.s32 %s88, 1
      %s90 = scalar_select %p87, %s88, %s89
      %p93 = pneg %p87
      %p94 = scmp.eq.s32.totalorder %s12, 1
      %p95 = por %p93, %p94
      %p96 = scmp.ne.s32.totalorder %s88, %s91
      %p97 = scmp.eq.s32.totalorder %s12, 0
      %p98 = por %p96, %p97
      %p99 = scmp.ne.s32.totalorder %s88, %s91
      %p100 = scmp.eq.s32.totalorder %s17, 1
      %p101 = por %p99, %p100
      %p102 = scmp.ne.s32.totalorder %s91, %s92
      %p103 = scmp.eq.s32.totalorder %s17, 0
      %p104 = por %p102, %p103
      %p105 = scmp.ne.s32.totalorder %s91, %s92
      %p106 = scmp.eq.s32.totalorder %s18, 1
      %p107 = por %p105, %p106
      %p109 = scmp.ne.s32.totalorder %s92, %s108
      %p110 = scmp.eq.s32.totalorder %s18, 0
      %p111 = por %p109, %p110
      %p112 = scmp.le.s32.totalorder 1, %s12
      %p113 = scmp.lt.s32.totalorder %s12, 3
      %p114 = pnand %p112, %p113
      %p115 = pneg %p114
      // Predicated region
      $region9: #{tpu_custom_call.1} parent=5 // pred_check
        _
      $region10: #{tpu_custom_call.1} parent=5 // pred_check_branch
        %117 = sbr.rel (%p114) target = $region12
      $region11: #{tpu_custom_call.1} parent=5 // pred_region
        %s118 = ssub.s32 %s12, 1
        // Predicated region
        $region13: #{tpu_custom_call.1} parent=11 // pred_check
          %p119 = pneg %p50
        $region14: #{tpu_custom_call.1} parent=11 // pred_check_branch
          %121 = sbr.rel (%p119) target = $region16
        $region15: #{tpu_custom_call.1} parent=11 // pred_region
          %s122 = smul.u32 2, %s22
          %124 = vsyncadd [#allocation4], 0
          %s125 = smul.addr %s122, 4
          %s126 = scalar_lea.hbm %s0, %s125
          %s127 = sshll.u32 %s126, 4
          %s128 = int_to_ptr.hbm [resolvable:$true] %s127
          %s129 = sshll.u32 [#allocation3], 4
          %s130 = int_to_ptr.vmem [resolvable:$true] %s129
          %135 = dma.hbm_to_vmem [thread:$0]  %s128, 896, %s130, [#allocation4], 128, 128, 8
        $region16: #{tpu_custom_call.1} parent=11 // pred_fallthru
          _
      $region12: #{tpu_custom_call.1} parent=5 // pred_fallthru
        _
      %p136 = scmp.lt.s32.totalorder %s12, 2
      // Predicated region
      $region17: #{tpu_custom_call.1} parent=5 // pred_check
        %p137 = pneg %p136
      $region18: #{tpu_custom_call.1} parent=5 // pred_check_branch
        %139 = sbr.rel (%p137) target = $region20
      $region19: #{tpu_custom_call.1} parent=5 // pred_region
        // Predicated region
        $region21: #{tpu_custom_call.1} parent=19 // pred_check
          %p140 = pneg %p72
        $region22: #{tpu_custom_call.1} parent=19 // pred_check_branch
          %142 = sbr.rel (%p140) target = $region24
        $region23: #{tpu_custom_call.1} parent=19 // pred_region
          %s143 = sand.u32 %s62, 1
          %s144 = scalar_lea.sflag [#allocation6], %s143
          %s145 = sand.u32 %s62, 1
          %s146 = smul.addr %s145, 8
          %s147 = scalar_lea.vmem [#allocation5], %s146
          %s148 = smul.u32 2, %s20
          %150 = vsyncadd %s144, 0
          %s151 = smul.addr %s19, 2
          %s152 = sadd.s32 %s148, %s151
          %s153 = smul.addr %s152, 4
          %s154 = scalar_lea.hbm %s1, %s153
          %s156 = sshll.u32 %s154, 4
          %s157 = int_to_ptr.hbm [resolvable:$true] %s156
          %s158 = sshll.u32 %s147, 4
          %s159 = int_to_ptr.vmem [resolvable:$true] %s158
          %161 = dma.hbm_to_vmem [thread:$0]  %s157, 128, %s159, %s144
        $region24: #{tpu_custom_call.1} parent=19 // pred_fallthru
          _
      $region20: #{tpu_custom_call.1} parent=5 // pred_fallthru
        _
      %p162 = scmp.le.s32.totalorder 1, %s12
      %p163 = scmp.lt.s32.totalorder %s12, 3
      %p164 = pnand %p162, %p163
      %p165 = pneg %p164
      // Predicated region
      $region25: #{tpu_custom_call.1} parent=5 // pred_check
        _
      $region26: #{tpu_custom_call.1} parent=5 // pred_check_branch
        %167 = sbr.rel (%p164) target = $region28
      $region27: #{tpu_custom_call.1} parent=5 // pred_region
        %s168 = ssub.s32 %s12, 1
        // Predicated region
        $region29: #{tpu_custom_call.1} parent=27 // pred_check
          %p169 = pneg %p50
        $region30: #{tpu_custom_call.1} parent=27 // pred_check_branch
          %171 = sbr.rel (%p169) target = $region32
        $region31: #{tpu_custom_call.1} parent=27 // pred_region
          %173 = dma.done [#allocation4], 896
        $region32: #{tpu_custom_call.1} parent=27 // pred_fallthru
          _
        %s174 = sand.u32 %s65, 1
        %s175 = scalar_lea.sflag [#allocation6], %s174
        %s176 = sand.u32 %s65, 1
        %s177 = smul.addr %s176, 8
        %s178 = scalar_lea.vmem [#allocation5], %s177
        // Predicated region
        $region33: #{tpu_custom_call.1} parent=27 // pred_check
          %p179 = pneg %p78
        $region34: #{tpu_custom_call.1} parent=27 // pred_check_branch
          %181 = sbr.rel (%p179) target = $region36
        $region35: #{tpu_custom_call.1} parent=27 // pred_region
          %183 = dma.done %s175, 128
        $region36: #{tpu_custom_call.1} parent=27 // pred_fallthru
          _
        %p184 = pneg %p50
        %p185 = pneg %p47
        %s186 = sand.u32 %s65, 1
        %s187 = scalar_lea.sflag [#allocation6], %s186
        %s188 = sand.u32 %s65, 1
        %s189 = smul.addr %s188, 8
        %s190 = scalar_lea.vmem [#allocation5], %s189
        %p191 = pneg %p78
        %p192 = pneg %p75
        %p193 = pneg %p104
        %p194 = pneg %p101
        %p195 = scmp.lt.s32.totalorder %s21, 1
        %s196 = scalar_select %p195, %s21, 1
        %s197 = smul.addr %s196, 7
        %s198 = smul.addr %s197, 8
        %s199 = scalar_lea.vmem %s2, %s198
        %s200 = smul.u32 2, %s22
        %s201 = smul.u32 2, %s22
        %p202 = scmp.lt.s32.totalorder %s21, 1
        %s203 = scalar_select %p202, %s21, 1
        %s204 = smul.addr %s203, 7
        %s205 = smul.addr %s204, 8
        %s206 = scalar_lea.vmem %s2, %s205
        %p208 = scmp.eq.s32.totalorder %s22, 0
        // Predicated region
        $region37: #{tpu_custom_call.1} parent=27 // pred_check
          %p209 = pneg %p208
        $region38: #{tpu_custom_call.1} parent=27 // pred_check_branch
          %211 = sbr.rel (%p209) target = $region40
        $region39: #{tpu_custom_call.1} parent=27 // pred_region
          %vm212 = vcmask 31744
          %213 = vst.msk [vmem:[#allocation2] sm:$0xff] %vm212, 0.0
          %214 = vst.msk [vmem:[#allocation2 + $0x8] sm:$0xff] %vm212, 0.0
          %215 = vst.msk [vmem:[#allocation2 + $0x10] sm:$0xff] %vm212, 0.0
          %216 = vst.msk [vmem:[#allocation2 + $0x18] sm:$0xff] %vm212, 0.0
          %217 = vst.msk [vmem:[#allocation2 + $0x20] sm:$0xff] %vm212, 0.0
          %218 = vst.msk [vmem:[#allocation2 + $0x28] sm:$0xff] %vm212, 0.0
          %219 = vst.msk [vmem:[#allocation2 + $0x30] sm:$0xff] %vm212, 0.0
        $region40: #{tpu_custom_call.1} parent=27 // pred_fallthru
          _
        %v220 = vld [vmem:[%s178] sm:$0xff]
        %222 = vst [vmem:[#allocation1] ss:$2 sm:$0xff] %v220
        %v223 = vld.sshfl [vmem:[#allocation1] sm:$0xff pattern:$0x75316420]
        %v224 = vld.sshfl [vmem:[#allocation1 + $0x8] sm:$0xff pattern:$0x75316420]
        %v227 = vpack.c.bf16 %v223, %v223
        %v228 = vpack.c.bf16 %v224, %v224
        %v229 = vld [vmem:[#allocation2] sm:$0xff]
        %v230 = vld [vmem:[#allocation2 + $0x8] sm:$0xff]
        %v231 = vld [vmem:[#allocation2 + $0x10] sm:$0xff]
        %v232 = vld [vmem:[#allocation2 + $0x18] sm:$0xff]
        %v233 = vld [vmem:[#allocation2 + $0x20] sm:$0xff]
        %v234 = vld [vmem:[#allocation2 + $0x28] sm:$0xff]
        %v235 = vld [vmem:[#allocation2 + $0x30] sm:$0xff]
        %v236 = vld [vmem:[#allocation3] sm:$0xff]
        %v237 = vld [vmem:[#allocation3 + $0x8] sm:$0xff]
        %v238 = vld [vmem:[#allocation3 + $0x10] sm:$0xff]
        %v239 = vld [vmem:[#allocation3 + $0x18] sm:$0xff]
        %v240 = vld [vmem:[#allocation3 + $0x20] sm:$0xff]
        %v241 = vld [vmem:[#allocation3 + $0x28] sm:$0xff]
        %v242 = vld [vmem:[#allocation3 + $0x30] sm:$0xff]
        %v250 = vunpack.c.l.b16 %v236
        %v251 = vunpack.c.h.b16 %v236
        %v252 = vunpack.c.l.b16 %v237
        %v253 = vunpack.c.h.b16 %v237
        %v254 = vunpack.c.l.b16 %v238
        %v255 = vunpack.c.h.b16 %v238
        %v256 = vunpack.c.l.b16 %v239
        %v257 = vunpack.c.h.b16 %v239
        %v258 = vunpack.c.l.b16 %v240
        %v259 = vunpack.c.h.b16 %v240
        %v260 = vunpack.c.l.b16 %v241
        %v261 = vunpack.c.h.b16 %v241
        %v262 = vunpack.c.l.b16 %v242
        %v263 = vunpack.c.h.b16 %v242
        %v264 = vpack.c.b16 %v252, %v250
        %v265 = vpack.c.b16 %v253, %v251
        %v266 = vpack.c.b16 %v256, %v254
        %v267 = vpack.c.b16 %v257, %v255
        %v268 = vpack.c.b16 %v260, %v258
        %v269 = vpack.c.b16 %v261, %v259
        %v270 = vpack.c.b16 %v262, %v262
        %v271 = vpack.c.b16 %v263, %v263
        %280 = vmatpush.bf16.xpose.msra.mxu0 0
        %281 = vmatpush.bf16.xpose.msra.mxu0 0
        %282 = vmatpush.bf16.xpose.msra.mxu0 0
        %283 = vmatpush.bf16.xpose.msra.mxu0 0
        %284 = vmatpush.bf16.xpose.msra.mxu0 0
        %285 = vmatpush.bf16.xpose.msra.mxu0 0
        %286 = vmatpush.bf16.xpose.msra.mxu0 0
        %287 = vmatpush.bf16.xpose.msra.mxu0 %v227
        %288 = vmatmul.bf16.gmra.mxu0 %v264
        %v289 = vpop.f32.mrf.mxu0
        %v290 = vadd.f32 0.0, %v289
        %v291 = vpop.f32.mrf.mxu0
        %v292 = vadd.f32 0.0, %v291
        %293 = vmatmul.bf16.gmra.mxu0 %v266
        %v294 = vpop.f32.mrf.mxu0
        %v295 = vadd.f32 0.0, %v294
        %v296 = vpop.f32.mrf.mxu0
        %v297 = vadd.f32 0.0, %v296
        %298 = vmatmul.bf16.gmra.mxu0 %v268
        %v299 = vpop.f32.mrf.mxu0
        %v300 = vadd.f32 0.0, %v299
        %v301 = vpop.f32.mrf.mxu0
        %v302 = vadd.f32 0.0, %v301
        %303 = vmatmul.bf16.gmra.mxu0 %v270
        %v304 = vpop.f32.mrf.mxu0
        %v305 = vadd.f32 0.0, %v304
        %v306 = vpop.f32.mrf.mxu0
        %307 = vdwg.mxu0
        %308 = vmatpush.bf16.xpose.msra.mxu0 0
        %309 = vmatpush.bf16.xpose.msra.mxu0 0
        %310 = vmatpush.bf16.xpose.msra.mxu0 0
        %311 = vmatpush.bf16.xpose.msra.mxu0 0
        %312 = vmatpush.bf16.xpose.msra.mxu0 0
        %313 = vmatpush.bf16.xpose.msra.mxu0 0
        %314 = vmatpush.bf16.xpose.msra.mxu0 0
        %315 = vmatpush.bf16.xpose.msra.mxu0 %v228
        %316 = vmatmul.bf16.gmra.mxu0 %v265
        %v317 = vpop.f32.mrf.mxu0
        %v318 = vadd.f32 %v290, %v317
        %v319 = vpop.f32.mrf.mxu0
        %v320 = vadd.f32 %v292, %v319
        %321 = vmatmul.bf16.gmra.mxu0 %v267
        %v322 = vpop.f32.mrf.mxu0
        %v323 = vadd.f32 %v295, %v322
        %v324 = vpop.f32.mrf.mxu0
        %v325 = vadd.f32 %v297, %v324
        %326 = vmatmul.bf16.gmra.mxu0 %v269
        %v327 = vpop.f32.mrf.mxu0
        %v328 = vadd.f32 %v300, %v327
        %v329 = vpop.f32.mrf.mxu0
        %v330 = vadd.f32 %v302, %v329
        %331 = vmatmul.bf16.gmra.mxu0 %v271
        %v332 = vpop.f32.mrf.mxu0
        %v333 = vadd.f32 %v305, %v332
        %v334 = vpop.f32.mrf.mxu0
        %335 = vdwg.mxu0
        %v336 = vadd.f32 %v229, %v318
        %v337 = vadd.f32 %v230, %v320
        %v338 = vadd.f32 %v231, %v323
        %v339 = vadd.f32 %v232, %v325
        %v340 = vadd.f32 %v233, %v328
        %v341 = vadd.f32 %v234, %v330
        %v342 = vadd.f32 %v235, %v333
        %vm343 = vcmask 31744
        %344 = vst.msk [vmem:[#allocation2] sm:$0xff] %vm343, %v336
        %345 = vst.msk [vmem:[#allocation2 + $0x8] sm:$0xff] %vm343, %v337
        %346 = vst.msk [vmem:[#allocation2 + $0x10] sm:$0xff] %vm343, %v338
        %347 = vst.msk [vmem:[#allocation2 + $0x18] sm:$0xff] %vm343, %v339
        %348 = vst.msk [vmem:[#allocation2 + $0x20] sm:$0xff] %vm343, %v340
        %349 = vst.msk [vmem:[#allocation2 + $0x28] sm:$0xff] %vm343, %v341
        %350 = vst.msk [vmem:[#allocation2 + $0x30] sm:$0xff] %vm343, %v342
        // Predicated region
        $region41: #{tpu_custom_call.1} parent=27 // pred_check
          %p351 = pneg %p208
        $region42: #{tpu_custom_call.1} parent=27 // pred_check_branch
          %353 = sbr.rel (%p351) target = $region44
        $region43: #{tpu_custom_call.1} parent=27 // pred_region
          %v354 = vld [vmem:[#allocation2] sm:$0xff]
          %v355 = vld [vmem:[#allocation2 + $0x8] sm:$0xff]
          %v356 = vld [vmem:[#allocation2 + $0x10] sm:$0xff]
          %v357 = vld [vmem:[#allocation2 + $0x18] sm:$0xff]
          %v358 = vld [vmem:[#allocation2 + $0x20] sm:$0xff]
          %v359 = vld [vmem:[#allocation2 + $0x28] sm:$0xff]
          %v360 = vld [vmem:[#allocation2 + $0x30] sm:$0xff]
          %361 = vst.msk [vmem:[%s206] sm:$0xff] %vm343, %v354
          %362 = vst.msk [vmem:[%s206 + $0x8] sm:$0xff] %vm343, %v355
          %363 = vst.msk [vmem:[%s206 + $0x10] sm:$0xff] %vm343, %v356
          %364 = vst.msk [vmem:[%s206 + $0x18] sm:$0xff] %vm343, %v357
          %365 = vst.msk [vmem:[%s206 + $0x20] sm:$0xff] %vm343, %v358
          %366 = vst.msk [vmem:[%s206 + $0x28] sm:$0xff] %vm343, %v359
          %367 = vst.msk [vmem:[%s206 + $0x30] sm:$0xff] %vm343, %v360
        $region44: #{tpu_custom_call.1} parent=27 // pred_fallthru
          _
        %p368 = scmp.lt.s32.totalorder %s21, 1
        %s369 = scalar_select %p368, %s21, 1
        %s370 = smul.addr %s369, 7
        %s371 = smul.addr %s370, 8
        %s372 = scalar_lea.vmem %s2, %s371
        // Predicated region
        $region45: #{tpu_custom_call.1} parent=27 // pred_check
          %p373 = pneg %p101
        $region46: #{tpu_custom_call.1} parent=27 // pred_check_branch
          %375 = sbr.rel (%p373) target = $region48
        $region47: #{tpu_custom_call.1} parent=27 // pred_region
          _
        $region48: #{tpu_custom_call.1} parent=27 // pred_fallthru
          _
      $region28: #{tpu_custom_call.1} parent=5 // pred_fallthru
        _
      %p376 = scmp.le.s32.totalorder 2, %s12
      // Predicated region
      $region49: #{tpu_custom_call.1} parent=5 // pred_check
        %p377 = pneg %p376
      $region50: #{tpu_custom_call.1} parent=5 // pred_check_branch
        %379 = sbr.rel (%p377) target = $region52
      $region51: #{tpu_custom_call.1} parent=5 // pred_region
        %s380 = ssub.s32 %s12, 2
        // Predicated region
        $region53: #{tpu_custom_call.1} parent=51 // pred_check
          %p381 = pneg %p107
        $region54: #{tpu_custom_call.1} parent=51 // pred_check_branch
          %383 = sbr.rel (%p381) target = $region56
        $region55: #{tpu_custom_call.1} parent=51 // pred_region
          %p384 = scmp.lt.s32.totalorder %s23, 1
          %s385 = scalar_select %p384, %s23, 1
          %s386 = smul.addr %s385, 7
          %s387 = smul.addr %s386, 8
          %s388 = scalar_lea.vmem %s2, %s387
        $region56: #{tpu_custom_call.1} parent=51 // pred_fallthru
          _
      $region52: #{tpu_custom_call.1} parent=5 // pred_fallthru
        _
    $region6: #{tpu_custom_call.1} parent=1 // loop_footer
      %s16 = sadd.s32 1, %s12
    $region7: #{tpu_custom_call.1} parent=1 // loop_footer_branch
      %11 = sbr.rel target = $region3
    $region8: #{tpu_custom_call.1} parent=1 // loop_exit
      _
    %389 = vsyncpa [#allocation4], 1
    %s390 = scalar_lea.sflag [#allocation4], 1
    %391 = vsyncpa %s390, 1
    %392 = vsyncpa [#allocation6], 1
    %s393 = scalar_lea.sflag [#allocation6], 1
    %394 = vsyncpa %s393, 1

</llo_original>
